<compile_context>
chip_gen: v7x
topology: tpu7x:2x2x1
jax: 0.10.0
libtpu: 0.0.40
codegen_flags: <defaults>
</compile_context>

<pallas_src>
import functools

import jax
import jax.numpy as jnp
from jax.experimental import pallas as pl
from jax.experimental.pallas import tpu as pltpu

EXT = 4          # Bottleneck.extention
KSIZE = 7        # conv2 kernel size
PAD = 3          # conv2 padding
BN_EPS = 1e-5


def _round_up(a, m):
    return ((a + m - 1) // m) * m


def _segments_per_step(n_seg, lp, max_lanes=512):
    """Largest divisor of n_seg whose lane tile (s * lp) fits max_lanes."""
    best = 1
    for s in range(1, n_seg + 1):
        if n_seg % s == 0 and s * lp <= max_lanes:
            best = s
    return best


# --------------------------------------------------------------------------- #
# Kernel
# --------------------------------------------------------------------------- #
def _bottleneck_kernel(x_ref, w1_ref, w2_ref, w3_ref, b_ref, o_ref, col_ref, *,
                       L, Lp, P, Cout, compute_dtype):
    TL = x_ref.shape[1]                       # lanes in this tile (multiple of Lp)

    # Packed folded-BN biases (f32): [b1 | b2 | b3].
    b1 = b_ref[0:P, :]                        # (P, 1)
    b2 = b_ref[Cout:Cout + P, :]              # (P, 1)
    b3 = b_ref[2 * Cout:3 * Cout, :]          # (Cout, 1)

    # ---- conv1 (1x1) + folded bn1 + relu (f32 accumulate) -------------------
    y1 = jnp.dot(w1_ref[...], x_ref[...], preferred_element_type=jnp.float32)
    y1 = jnp.maximum(y1 + b1, 0.0)            # (P, TL) f32

    # Zero each Lp segment's pad tail (so conv2 sees true zero padding and the
    # circular rolls only ever wrap zeros), folded into the single cast to the
    # compute dtype *before* the rolls -> im2col path is half-width in bf16.
    lane = jax.lax.broadcasted_iota(jnp.int32, (1, TL), 1)
    valid = (lane % Lp) < L
    y1c = jnp.where(valid, y1, 0.0).astype(compute_dtype)

    # ---- conv2 (k=7, pad=3): 7 lane rolls -> im2col scratch -> one matmul ---
    for k in range(KSIZE):
        tap = y1c if k == PAD else pltpu.roll(y1c, shift=(PAD - k) % TL, axis=1)
        col_ref[k * P:(k + 1) * P, :] = tap
    y2 = jnp.dot(w2_ref[...], col_ref[...], preferred_element_type=jnp.float32)
    y2 = jnp.maximum(y2 + b2, 0.0).astype(compute_dtype)      # (P, TL)

    # ---- conv3 (1x1) + folded bn3 + relu ------------------------------------
    y3 = jnp.dot(w3_ref[...], y2, preferred_element_type=jnp.float32)
    y3 = jnp.maximum(y3 + b3, 0.0)                             # (Cout, TL) f32

    # ---- identity residual + final relu (re-read x: short live range) -------
    res = x_ref[...].astype(jnp.float32)
    o_ref[...] = jnp.maximum(y3 + res, 0.0).astype(o_ref.dtype)


# --------------------------------------------------------------------------- #
# Per-layer wrapper (kernel activation layout; no per-layer pad/cast/slice)
# --------------------------------------------------------------------------- #
def bottleneck_apply(x_cl, w1f, w2f, w3f, b_pack, *, L, Lp,
                     compute_dtype=jnp.bfloat16):
    """x_cl: (Cin, n_seg*Lp) activations in `compute_dtype`, each Lp segment is
    one batch element with a zero-padded tail.  Weights are BN-folded and
    already in `compute_dtype`; b_pack is (3*Cout, 1) f32.  Returns
    (Cout, n_seg*Lp) in `compute_dtype` (pad columns are not zero)."""
    Cin, Ltot = x_cl.shape
    P = w1f.shape[0]
    Cout = w3f.shape[0]
    assert Cout == Cin, "identity residual needs inplanes == planes * 4"
    assert Lp % 128 == 0 and Lp >= L + PAD and Ltot % Lp == 0
    n_seg = Ltot // Lp

    sb = _segments_per_step(n_seg, Lp)        # whole segments per grid step
    TL = sb * Lp
    grid = (Ltot // TL,)

    kernel = functools.partial(_bottleneck_kernel, L=L, Lp=Lp, P=P, Cout=Cout,
                               compute_dtype=compute_dtype)

    const = lambda shape: pl.BlockSpec(shape, lambda t: (0,) * len(shape))

    return pl.pallas_call(
        kernel,
        out_shape=jax.ShapeDtypeStruct((Cout, Ltot), compute_dtype),
        grid=grid,
        in_specs=[
            pl.BlockSpec((Cin, TL), lambda t: (0, t)),
            const((P, Cin)),
            const((P, KSIZE * P)),
            const((Cout, P)),
            const((3 * Cout, 1)),
        ],
        out_specs=pl.BlockSpec((Cout, TL), lambda t: (0, t)),
        scratch_shapes=[pltpu.VMEM((KSIZE * P, TL), compute_dtype)],
        compiler_params=pltpu.CompilerParams(
            dimension_semantics=("parallel",),
            vmem_limit_bytes=32 * 1024 * 1024),
    )(x_cl, w1f, w2f, w3f, b_pack)


# --------------------------------------------------------------------------- #
# Parameter packing + model-boundary layout conversion (one-time, not per layer)
# --------------------------------------------------------------------------- #
def fold_bn(gamma, beta, mean, var):
    scale = gamma / jnp.sqrt(var + BN_EPS)
    bias = beta - mean * scale
    return scale, bias


def pack_params(w1_t, w2_t, w3_t, bn1, bn2, bn3, *, compute_dtype=jnp.bfloat16):
    """PyTorch-layout conv weights (O, I, K) + eval BN params -> kernel arrays."""
    P = w1_t.shape[0]
    Cout = w3_t.shape[0]
    s1, b1 = fold_bn(*bn1)
    s2, b2 = fold_bn(*bn2)
    s3, b3 = fold_bn(*bn3)
    w1f = (w1_t[:, :, 0] * s1[:, None]).astype(compute_dtype)            # (P, Cin)
    # im2col weight: column index k*P + i  <->  scratch row k*P + i
    w2f = (jnp.transpose(w2_t, (0, 2, 1)).reshape(P, KSIZE * P)
           * s2[:, None]).astype(compute_dtype)                          # (P, K*P)
    w3f = (w3_t[:, :, 0] * s3[:, None]).astype(compute_dtype)            # (Cout, P)
    b_pack = jnp.zeros((3 * Cout, 1), jnp.float32)
    b_pack = b_pack.at[0:P, 0].set(b1)
    b_pack = b_pack.at[Cout:Cout + P, 0].set(b2)
    b_pack = b_pack.at[2 * Cout:3 * Cout, 0].set(b3)
    return w1f, w2f, w3f, b_pack


def to_kernel_layout(x_ncl, Lp, dtype):
    """(N, C, L) -> (C, N*Lp): zero-pad L to Lp and fold batch into lanes."""
    N, C, L = x_ncl.shape
    x = jnp.pad(x_ncl, ((0, 0), (0, 0), (0, Lp - L))).astype(dtype)
    return jnp.transpose(x, (1, 0, 2)).reshape(C, N * Lp)


def from_kernel_layout(y_cl, N, L, Lp):
    """(C, N*Lp) -> (N, C, L), dropping the per-segment pad columns."""
    C = y_cl.shape[0]
    return jnp.transpose(y_cl.reshape(C, N, Lp), (1, 0, 2))[:, :, :L]


# --------------------------------------------------------------------------- #
# Pure-JAX reference
# --------------------------------------------------------------------------- #
def reference_forward(x_ncl, w1_t, w2_t, w3_t, bn1, bn2, bn3):
    """Reference using PyTorch-layout (O, I, K) conv weights, eval-mode BN."""
    dn = ("NCH", "OIH", "NCH")

    def bn(y, p):
        g, b, m, v = p
        inv = g / jnp.sqrt(v + BN_EPS)
        return (y - m[None, :, None]) * inv[None, :, None] + b[None, :, None]

    y = jax.lax.conv_general_dilated(x_ncl, w1_t, (1,), [(0, 0)],
                                     dimension_numbers=dn)
    y = jnp.maximum(bn(y, bn1), 0.0)
    y = jax.lax.conv_general_dilated(y, w2_t, (1,), [(PAD, PAD)],
                                     dimension_numbers=dn)
    y = jnp.maximum(bn(y, bn2), 0.0)
    y = jax.lax.conv_general_dilated(y, w3_t, (1,), [(0, 0)],
                                     dimension_numbers=dn)
    y = jnp.maximum(bn(y, bn3), 0.0)
    return jnp.maximum(y + x_ncl, 0.0)


if __name__ == "__main__":
    # stride=1, downsample=None (identity residual => inplanes == planes*4).
    # planes=8 keeps every sublane slice 8-aligned (P, Cout multiples of 8).
    N, L = 2, 16
    planes = 8
    inplanes = planes * EXT                     # 32

    key = jax.random.PRNGKey(0)
    ks = jax.random.split(key, 8)

    x = jax.random.normal(ks[0], (N, inplanes, L), dtype=jnp.float32)

    # Conv weights in PyTorch (out, in, k) layout.
    w1_t = jax.random.normal(ks[1], (planes, inplanes, 1), jnp.float32) * 0.1
    w2_t = jax.random.normal(ks[2], (planes, planes, KSIZE), jnp.float32) * 0.1
    w3_t = jax.random.normal(ks[3], (planes * EXT, planes, 1), jnp.float32) * 0.1

    def bn_params(k, c):
        k1, k2, k3, k4 = jax.random.split(k, 4)
        gamma = 1.0 + 0.1 * jax.random.normal(k1, (c,), jnp.float32)
        beta = 0.1 * jax.random.normal(k2, (c,), jnp.float32)
        mean = 0.1 * jax.random.normal(k3, (c,), jnp.float32)
        var = 1.0 + 0.1 * jax.random.uniform(k4, (c,), jnp.float32)
        return gamma, beta, mean, var

    bn1 = bn_params(ks[4], planes)
    bn2 = bn_params(ks[5], planes)
    bn3 = bn_params(ks[6], planes * EXT)

    ref = reference_forward(x, w1_t, w2_t, w3_t, bn1, bn2, bn3)

    Lp = _round_up(L + PAD, 128)

    # ---- exact path (f32 matmuls) -- tight tolerance -------------------------
    p32 = pack_params(w1_t, w2_t, w3_t, bn1, bn2, bn3, compute_dtype=jnp.float32)
    x32 = to_kernel_layout(x, Lp, jnp.float32)
    y32 = jax.block_until_ready(
        bottleneck_apply(x32, *p32, L=L, Lp=Lp, compute_dtype=jnp.float32))
    out_f32 = from_kernel_layout(y32, N, L, Lp)
    assert out_f32.shape == (N, inplanes, L)
    err32 = jnp.max(jnp.abs(out_f32 - ref))
    assert jnp.allclose(out_f32, ref, atol=1e-4, rtol=1e-4), f"f32 max err {err32}"

    # ---- fast path (bf16 activations/weights, f32 accumulate) ----------------
    # NOTE: the skip path adds the bf16-cast x, so it carries bf16 rounding vs
    # the f32 PyTorch reference (well within this tolerance).
    pbf = pack_params(w1_t, w2_t, w3_t, bn1, bn2, bn3, compute_dtype=jnp.bfloat16)
    xbf = to_kernel_layout(x, Lp, jnp.bfloat16)
    ybf = jax.block_until_ready(
        bottleneck_apply(xbf, *pbf, L=L, Lp=Lp, compute_dtype=jnp.bfloat16))
    out_bf16 = from_kernel_layout(ybf, N, L, Lp).astype(jnp.float32)
    errbf = jnp.max(jnp.abs(out_bf16 - ref))
    assert jnp.allclose(out_bf16, ref, atol=5e-2, rtol=5e-2), f"bf16 max err {errbf}"

    print("KERNEL_OK")
</pallas_src>

<mosaic_0001>
module attributes {stable_mosaic.version = 11 : i64} {
  func.func @_bottleneck_kernel(%arg0: i32, %arg1: memref<32x256xf32, #tpu.memory_space<vmem>>, %arg2: memref<8x32xf32, #tpu.memory_space<vmem>>, %arg3: memref<8x56xf32, #tpu.memory_space<vmem>>, %arg4: memref<32x8xf32, #tpu.memory_space<vmem>>, %arg5: memref<96x1xf32, #tpu.memory_space<vmem>>, %arg6: memref<32x256xf32, #tpu.memory_space<vmem>>, %arg7: memref<56x256xf32, #tpu.memory_space<vmem>>) attributes {dimension_semantics = [#tpu.dimension_semantics<parallel>], iteration_bounds = array<i64: 1>, scalar_prefetch = 0 : i64, scratch_operands = 1 : i64, tpu.core_type = #tpu.core_type<tc>, window_params = [{transform_indices = @transform_0, window_bounds = array<i64: 32, 256>}, {pipeline_mode = #tpu.pipeline_mode<synchronous>, transform_indices = @transform_1, window_bounds = array<i64: 8, 32>}, {pipeline_mode = #tpu.pipeline_mode<synchronous>, transform_indices = @transform_2, window_bounds = array<i64: 8, 56>}, {pipeline_mode = #tpu.pipeline_mode<synchronous>, transform_indices = @transform_3, window_bounds = array<i64: 32, 8>}, {pipeline_mode = #tpu.pipeline_mode<synchronous>, transform_indices = @transform_4, window_bounds = array<i64: 96, 1>}, {transform_indices = @transform_5, window_bounds = array<i64: 32, 256>}]} {
    %c0 = arith.constant 0 : index
    %c0_0 = arith.constant 0 : index
    %0 = vector.load %arg5[%c0, %c0_0] : memref<96x1xf32, #tpu.memory_space<vmem>>, vector<8x1xf32>
    %c32 = arith.constant 32 : index
    %c0_1 = arith.constant 0 : index
    %1 = vector.load %arg5[%c32, %c0_1] : memref<96x1xf32, #tpu.memory_space<vmem>>, vector<8x1xf32>
    %c64 = arith.constant 64 : index
    %c0_2 = arith.constant 0 : index
    %2 = vector.load %arg5[%c64, %c0_2] : memref<96x1xf32, #tpu.memory_space<vmem>>, vector<32x1xf32>
    %c0_3 = arith.constant 0 : index
    %c0_4 = arith.constant 0 : index
    %3 = vector.load %arg2[%c0_3, %c0_4] : memref<8x32xf32, #tpu.memory_space<vmem>>, vector<8x32xf32>
    %c0_5 = arith.constant 0 : index
    %c0_6 = arith.constant 0 : index
    %4 = vector.load %arg1[%c0_5, %c0_6] : memref<32x256xf32, #tpu.memory_space<vmem>>, vector<32x256xf32>
    %cst = arith.constant dense<0.000000e+00> : vector<8x256xf32>
    %5 = tpu.matmul %3, %4, %cst {dimension_numbers = #tpu.dot_dimension_numbers<[1], [0], [0], [1], [0, 0, 1, 1], [], []>} : vector<8x32xf32>, vector<32x256xf32>, vector<8x256xf32> -> vector<8x256xf32>
    %6 = vector.broadcast %0 : vector<8x1xf32> to vector<8x256xf32>
    %7 = arith.addf %5, %6 : vector<8x256xf32>
    %cst_7 = arith.constant 0.000000e+00 : f32
    %8 = vector.broadcast %cst_7 : f32 to vector<8x256xf32>
    %9 = arith.maximumf %7, %8 : vector<8x256xf32>
    %10 = tpu.iota {dimensions = array<i32: 1>} : vector<1x256xi32>
    %c128_i32 = arith.constant 128 : i32
    %c0_i32 = arith.constant 0 : i32
    %11 = arith.cmpi eq, %c128_i32, %c0_i32 : i32
    %c1_i32 = arith.constant 1 : i32
    %12 = arith.select %11, %c1_i32, %c128_i32 : i32
    %13 = vector.broadcast %12 : i32 to vector<1x256xi32>
    %14 = arith.remsi %10, %13 : vector<1x256xi32>
    %c0_i32_8 = arith.constant 0 : i32
    %15 = vector.broadcast %c0_i32_8 : i32 to vector<1x256xi32>
    %16 = arith.cmpi ne, %14, %15 : vector<1x256xi32>
    %c0_i32_9 = arith.constant 0 : i32
    %17 = vector.broadcast %c0_i32_9 : i32 to vector<1x256xi32>
    %18 = arith.cmpi slt, %14, %17 : vector<1x256xi32>
    %c0_i32_10 = arith.constant 0 : i32
    %19 = arith.cmpi slt, %12, %c0_i32_10 : i32
    %20 = vector.broadcast %19 : i1 to vector<1x256xi1>
    %21 = vector.broadcast %20 : vector<1x256xi1> to vector<1x256xi1>
    %22 = arith.xori %18, %21 : vector<1x256xi1>
    %23 = arith.andi %22, %16 : vector<1x256xi1>
    %24 = vector.broadcast %12 : i32 to vector<1x256xi32>
    %25 = arith.addi %14, %24 : vector<1x256xi32>
    %26 = arith.select %23, %25, %14 : vector<1x256xi1>, vector<1x256xi32>
    %c16_i32 = arith.constant 16 : i32
    %27 = vector.broadcast %c16_i32 : i32 to vector<1x256xi32>
    %28 = arith.cmpi slt, %26, %27 : vector<1x256xi32>
    %cst_11 = arith.constant 0.000000e+00 : f32
    %29 = vector.shape_cast %28 : vector<1x256xi1> to vector<1x256xi1>
    %30 = vector.broadcast %29 : vector<1x256xi1> to vector<8x256xi1>
    %31 = vector.broadcast %cst_11 : f32 to vector<8x256xf32>
    %32 = arith.select %30, %9, %31 : vector<8x256xi1>, vector<8x256xf32>
    %c3_i32 = arith.constant 3 : i32
    %33 = tpu.dynamic_rotate %32 by %c3_i32 dim 1 : vector<8x256xf32>, i32 -> vector<8x256xf32>
    %c0_12 = arith.constant 0 : index
    %c0_13 = arith.constant 0 : index
    %34 = vector.load %arg7[%c0_12, %c0_13] : memref<56x256xf32, #tpu.memory_space<vmem>>, vector<8x256xf32>
    tpu.vector_store %arg7[%c0_12, %c0_13], %33 {strides = array<i32>} : memref<56x256xf32, #tpu.memory_space<vmem>>, vector<8x256xf32>,
    %c2_i32 = arith.constant 2 : i32
    %35 = tpu.dynamic_rotate %32 by %c2_i32 dim 1 : vector<8x256xf32>, i32 -> vector<8x256xf32>
    %c8 = arith.constant 8 : index
    %c0_14 = arith.constant 0 : index
    %36 = vector.load %arg7[%c8, %c0_14] : memref<56x256xf32, #tpu.memory_space<vmem>>, vector<8x256xf32>
    tpu.vector_store %arg7[%c8, %c0_14], %35 {strides = array<i32>} : memref<56x256xf32, #tpu.memory_space<vmem>>, vector<8x256xf32>,
    %c1_i32_15 = arith.constant 1 : i32
    %37 = tpu.dynamic_rotate %32 by %c1_i32_15 dim 1 : vector<8x256xf32>, i32 -> vector<8x256xf32>
    %c16 = arith.constant 16 : index
    %c0_16 = arith.constant 0 : index
    %38 = vector.load %arg7[%c16, %c0_16] : memref<56x256xf32, #tpu.memory_space<vmem>>, vector<8x256xf32>
    tpu.vector_store %arg7[%c16, %c0_16], %37 {strides = array<i32>} : memref<56x256xf32, #tpu.memory_space<vmem>>, vector<8x256xf32>,
    %c24 = arith.constant 24 : index
    %c0_17 = arith.constant 0 : index
    %39 = vector.load %arg7[%c24, %c0_17] : memref<56x256xf32, #tpu.memory_space<vmem>>, vector<8x256xf32>
    tpu.vector_store %arg7[%c24, %c0_17], %32 {strides = array<i32>} : memref<56x256xf32, #tpu.memory_space<vmem>>, vector<8x256xf32>,
    %c255_i32 = arith.constant 255 : i32
    %40 = tpu.dynamic_rotate %32 by %c255_i32 dim 1 : vector<8x256xf32>, i32 -> vector<8x256xf32>
    %c32_18 = arith.constant 32 : index
    %c0_19 = arith.constant 0 : index
    %41 = vector.load %arg7[%c32_18, %c0_19] : memref<56x256xf32, #tpu.memory_space<vmem>>, vector<8x256xf32>
    tpu.vector_store %arg7[%c32_18, %c0_19], %40 {strides = array<i32>} : memref<56x256xf32, #tpu.memory_space<vmem>>, vector<8x256xf32>,
    %c254_i32 = arith.constant 254 : i32
    %42 = tpu.dynamic_rotate %32 by %c254_i32 dim 1 : vector<8x256xf32>, i32 -> vector<8x256xf32>
    %c40 = arith.constant 40 : index
    %c0_20 = arith.constant 0 : index
    %43 = vector.load %arg7[%c40, %c0_20] : memref<56x256xf32, #tpu.memory_space<vmem>>, vector<8x256xf32>
    tpu.vector_store %arg7[%c40, %c0_20], %42 {strides = array<i32>} : memref<56x256xf32, #tpu.memory_space<vmem>>, vector<8x256xf32>,
    %c253_i32 = arith.constant 253 : i32
    %44 = tpu.dynamic_rotate %32 by %c253_i32 dim 1 : vector<8x256xf32>, i32 -> vector<8x256xf32>
    %c48 = arith.constant 48 : index
    %c0_21 = arith.constant 0 : index
    %45 = vector.load %arg7[%c48, %c0_21] : memref<56x256xf32, #tpu.memory_space<vmem>>, vector<8x256xf32>
    tpu.vector_store %arg7[%c48, %c0_21], %44 {strides = array<i32>} : memref<56x256xf32, #tpu.memory_space<vmem>>, vector<8x256xf32>,
    %c0_22 = arith.constant 0 : index
    %c0_23 = arith.constant 0 : index
    %46 = vector.load %arg3[%c0_22, %c0_23] : memref<8x56xf32, #tpu.memory_space<vmem>>, vector<8x56xf32>
    %c0_24 = arith.constant 0 : index
    %c0_25 = arith.constant 0 : index
    %47 = vector.load %arg7[%c0_24, %c0_25] : memref<56x256xf32, #tpu.memory_space<vmem>>, vector<56x256xf32>
    %cst_26 = arith.constant dense<0.000000e+00> : vector<8x256xf32>
    %48 = tpu.matmul %46, %47, %cst_26 {dimension_numbers = #tpu.dot_dimension_numbers<[1], [0], [0], [1], [0, 0, 1, 1], [], []>} : vector<8x56xf32>, vector<56x256xf32>, vector<8x256xf32> -> vector<8x256xf32>
    %49 = vector.broadcast %1 : vector<8x1xf32> to vector<8x256xf32>
    %50 = arith.addf %48, %49 : vector<8x256xf32>
    %cst_27 = arith.constant 0.000000e+00 : f32
    %51 = vector.broadcast %cst_27 : f32 to vector<8x256xf32>
    %52 = arith.maximumf %50, %51 : vector<8x256xf32>
    %c0_28 = arith.constant 0 : index
    %c0_29 = arith.constant 0 : index
    %53 = vector.load %arg4[%c0_28, %c0_29] : memref<32x8xf32, #tpu.memory_space<vmem>>, vector<32x8xf32>
    %cst_30 = arith.constant dense<0.000000e+00> : vector<32x256xf32>
    %54 = tpu.matmul %53, %52, %cst_30 {dimension_numbers = #tpu.dot_dimension_numbers<[1], [0], [0], [1], [0, 0, 1, 1], [], []>} : vector<32x8xf32>, vector<8x256xf32>, vector<32x256xf32> -> vector<32x256xf32>
    %55 = vector.broadcast %2 : vector<32x1xf32> to vector<32x256xf32>
    %56 = arith.addf %54, %55 : vector<32x256xf32>
    %cst_31 = arith.constant 0.000000e+00 : f32
    %57 = vector.broadcast %cst_31 : f32 to vector<32x256xf32>
    %58 = arith.maximumf %56, %57 : vector<32x256xf32>
    %c0_32 = arith.constant 0 : index
    %c0_33 = arith.constant 0 : index
    %59 = vector.load %arg1[%c0_32, %c0_33] : memref<32x256xf32, #tpu.memory_space<vmem>>, vector<32x256xf32>
    %60 = arith.addf %58, %59 : vector<32x256xf32>
    %cst_34 = arith.constant 0.000000e+00 : f32
    %61 = vector.broadcast %cst_34 : f32 to vector<32x256xf32>
    %62 = arith.maximumf %60, %61 : vector<32x256xf32>
    %c0_35 = arith.constant 0 : index
    %c0_36 = arith.constant 0 : index
    %63 = vector.load %arg6[%c0_35, %c0_36] : memref<32x256xf32, #tpu.memory_space<vmem>>, vector<32x256xf32>
    tpu.vector_store %arg6[%c0_35, %c0_36], %62 {strides = array<i32>} : memref<32x256xf32, #tpu.memory_space<vmem>>, vector<32x256xf32>,
    return
  }
  func.func @transform_0(%arg0: i32) -> (i32, i32) {
    %c0_i32 = arith.constant 0 : i32
    %c0_i32_0 = arith.constant 0 : i32
    return %c0_i32, %arg0 : i32, i32
  }
  func.func @transform_1(%arg0: i32) -> (i32, i32) {
    %c0_i32 = arith.constant 0 : i32
    %c0_i32_0 = arith.constant 0 : i32
    %c0_i32_1 = arith.constant 0 : i32
    return %c0_i32, %c0_i32_0 : i32, i32
  }
  func.func @transform_2(%arg0: i32) -> (i32, i32) {
    %c0_i32 = arith.constant 0 : i32
    %c0_i32_0 = arith.constant 0 : i32
    %c0_i32_1 = arith.constant 0 : i32
    return %c0_i32, %c0_i32_0 : i32, i32
  }
  func.func @transform_3(%arg0: i32) -> (i32, i32) {
    %c0_i32 = arith.constant 0 : i32
    %c0_i32_0 = arith.constant 0 : i32
    %c0_i32_1 = arith.constant 0 : i32
    return %c0_i32, %c0_i32_0 : i32, i32
  }
  func.func @transform_4(%arg0: i32) -> (i32, i32) {
    %c0_i32 = arith.constant 0 : i32
    %c0_i32_0 = arith.constant 0 : i32
    %c0_i32_1 = arith.constant 0 : i32
    return %c0_i32, %c0_i32_0 : i32, i32
  }
  func.func @transform_5(%arg0: i32) -> (i32, i32) {
    %c0_i32 = arith.constant 0 : i32
    %c0_i32_0 = arith.constant 0 : i32
    return %c0_i32, %arg0 : i32, i32
  }
}

</mosaic_0001>

<llo_original>
// kernel: tpu_custom_call.1
$region0: #{tpu_custom_call.1}
  #allocation0 [shape = 'u32[]', space=smem, size = 0x4, offset = 0x4, fixed_abs, tag = 'smem constant byte address 0x4 - core index']
  #allocation1 [shape = 'u32[144,128]{1,0:T(1,128)}', space=vmem, size = 0x12000, scoped, tag = 'internal scratch']
  #allocation2 [shape = 'f32[56,256]{1,0:T(8,128)}', space=vmem, size = 0xe000, scoped, tag = 'scratch operand']
  %s0 = inlined_call_operand.vmem [shape: f32[32,256], index: 0, kind: input, shape index: {}]
  %s1 = inlined_call_operand.vmem [shape: f32[8,32], index: 1, kind: input, shape index: {}]
  %s2 = inlined_call_operand.vmem [shape: f32[8,56], index: 2, kind: input, shape index: {}]
  %s3 = inlined_call_operand.vmem [shape: f32[32,8], index: 3, kind: input, shape index: {}]
  %s4 = inlined_call_operand.vmem [shape: f32[96,1], index: 4, kind: input, shape index: {}]
  %s5 = inlined_call_operand.hbm [shape: f32[32,256], index: 5, kind: output, shape index: {}]
  %s6 = sld [smem:[#allocation0]]
  $region30: #{tpu_custom_call.1} parent=0
    _
  %s8 = ssub.s32 1, %s6
  %s9 = scalar_select 0, %s8, %s6
  $region1: #{tpu_custom_call.1} parent=0
    #allocation3 [shape = 'u8[32768]{0}', space=vmem, size = 0x8000, scoped, tag = 'output window, operand 0, single buffered']
    #allocation4 [shape = 's32[1]{0}', space=sflag, size = 0x4, scoped, tag = 'scoped memory for tpu_custom_call.1']
    %10 = vsyncpa [#allocation4], 0
    // Predicated region
    $region2: #{tpu_custom_call.1} parent=1 // pred_check
      _
    $region3: #{tpu_custom_call.1} parent=1 // pred_check_branch
      %12 = sbr.rel (0) target = $region5
    $region4: #{tpu_custom_call.1} parent=1 // pred_region
      _
    $region5: #{tpu_custom_call.1} parent=1 // pred_fallthru
      _
    // Predicated region
    $region6: #{tpu_custom_call.1} parent=1 // pred_check
      _
    $region7: #{tpu_custom_call.1} parent=1 // pred_check_branch
      %14 = sbr.rel (0) target = $region9
    $region8: #{tpu_custom_call.1} parent=1 // pred_region
      _
    $region9: #{tpu_custom_call.1} parent=1 // pred_fallthru
      _
    // Predicated region
    $region10: #{tpu_custom_call.1} parent=1 // pred_check
      _
    $region11: #{tpu_custom_call.1} parent=1 // pred_check_branch
      %16 = sbr.rel (0) target = $region13
    $region12: #{tpu_custom_call.1} parent=1 // pred_region
      _
    $region13: #{tpu_custom_call.1} parent=1 // pred_fallthru
      _
    // Predicated region
    $region14: #{tpu_custom_call.1} parent=1 // pred_check
      _
    $region15: #{tpu_custom_call.1} parent=1 // pred_check_branch
      %18 = sbr.rel (0) target = $region17
    $region16: #{tpu_custom_call.1} parent=1 // pred_region
      _
    $region17: #{tpu_custom_call.1} parent=1 // pred_fallthru
      _
    // Predicated region
    $region18: #{tpu_custom_call.1} parent=1 // pred_check
      _
    $region19: #{tpu_custom_call.1} parent=1 // pred_check_branch
      %20 = sbr.rel (0) target = $region21
    $region20: #{tpu_custom_call.1} parent=1 // pred_region
      _
    $region21: #{tpu_custom_call.1} parent=1 // pred_fallthru
      _
    %v21 = vld [vmem:[%s4] sm:$0xff]
    %v22 = vld [vmem:[%s4 + $0x20] sm:$0xff]
    %v23 = vld [vmem:[%s4 + $0x40] sm:$0xff]
    %v24 = vld [vmem:[%s4 + $0x48] sm:$0xff]
    %v25 = vld [vmem:[%s4 + $0x50] sm:$0xff]
    %v26 = vld [vmem:[%s4 + $0x58] sm:$0xff]
    %v27 = vld [vmem:[%s1] sm:$0xff]
    %v28 = vld [vmem:[%s0] sm:$0xff]
    %v29 = vld [vmem:[%s0 + $0x8] sm:$0xff]
    %v30 = vld [vmem:[%s0 + $0x10] sm:$0xff]
    %v31 = vld [vmem:[%s0 + $0x18] sm:$0xff]
    %v32 = vld [vmem:[%s0 + $0x20] sm:$0xff]
    %v33 = vld [vmem:[%s0 + $0x28] sm:$0xff]
    %v34 = vld [vmem:[%s0 + $0x30] sm:$0xff]
    %v35 = vld [vmem:[%s0 + $0x38] sm:$0xff]
    %37 = vset.pattern.permute.xlu0 0
    %38 = vperm.xlu0 %37, %v21
    %v39 = vpop.permute.xlu0 %38
    %vm41 = vcmask 261120
    %v43 = vsel %vm41, %v27, 0
    %45 = vmatprep.subr.mxu0 %v29
    %46 = vmatpush1.msra.mxu0 %v28
    %47 = vmatprep.subr.mxu0 %v31
    %48 = vmatpush1.msra.mxu0 %v30
    %49 = vmatprep.subr.mxu0 %v33
    %50 = vmatpush1.msra.mxu0 %v32
    %51 = vmatprep.subr.mxu0 %v35
    %52 = vmatpush1.msra.mxu0 %v34
    %53 = vmatprep.subr.mxu0 0.0
    %54 = vmatpush1.msra.mxu0 0.0
    %55 = vmatprep.subr.mxu0 0.0
    %56 = vmatpush1.msra.mxu0 0.0
    %57 = vmatprep.subr.mxu0 0.0
    %58 = vmatpush1.msra.mxu0 0.0
    %59 = vmatprep.subr.mxu0 0.0
    %60 = vmatpush1.msra.mxu0 0.0
    %61 = vmatprep.subr.mxu0 0.0
    %62 = vmatpush1.msra.mxu0 0.0
    %63 = vmatprep.subr.mxu0 0.0
    %64 = vmatpush1.msra.mxu0 0.0
    %65 = vmatprep.subr.mxu0 0.0
    %66 = vmatpush1.msra.mxu0 0.0
    %67 = vmatprep.subr.mxu0 0.0
    %68 = vmatpush1.msra.mxu0 0.0
    %69 = vmatprep.subr.mxu0 0.0
    %70 = vmatpush1.msra.mxu0 0.0
    %71 = vmatprep.subr.mxu0 0.0
    %72 = vmatpush1.msra.mxu0 0.0
    %73 = vmatprep.subr.mxu0 0.0
    %74 = vmatpush1.msra.mxu0 0.0
    %75 = vmatprep.subr.mxu0 0.0
    %76 = vmatpush1.msra.mxu0 0.0
    %77 = vmatprep.subr.mxu0 0.0
    %78 = vmatpush1.msra.mxu0 0.0
    %79 = vmatprep.subr.mxu0 0.0
    %80 = vmatpush1.msra.mxu0 0.0
    %81 = vmatprep.subr.mxu0 0.0
    %82 = vmatpush1.msra.mxu0 0.0
    %83 = vmatprep.subr.mxu0 0.0
    %84 = vmatpush1.msra.mxu0 0.0
    %85 = vmatprep.subr.mxu0 0.0
    %86 = vmatpush1.msra.mxu0 0.0
    %87 = vmatprep.subr.mxu0 0.0
    %88 = vmatpush1.msra.mxu0 0.0
    %89 = vmatprep.subr.mxu0 0.0
    %90 = vmatpush1.msra.mxu0 0.0
    %91 = vmatprep.subr.mxu0 0.0
    %92 = vmatpush1.msra.mxu0 0.0
    %93 = vmatprep.subr.mxu0 0.0
    %94 = vmatpush1.msra.mxu0 0.0
    %95 = vmatprep.subr.mxu0 0.0
    %96 = vmatpush1.msra.mxu0 0.0
    %97 = vmatprep.subr.mxu0 0.0
    %98 = vmatpush1.msra.mxu0 0.0
    %99 = vmatprep.subr.mxu0 0.0
    %100 = vmatpush1.msra.mxu0 0.0
    %101 = vmatprep.subr.mxu0 0.0
    %102 = vmatpush1.msra.mxu0 0.0
    %103 = vmatprep.subr.mxu0 0.0
    %104 = vmatpush1.msra.mxu0 0.0
    %105 = vmatprep.subr.mxu0 0.0
    %106 = vmatpush1.msra.mxu0 0.0
    %107 = vmatprep.subr.mxu0 0.0
    %108 = vmatpush1.msra.mxu0 0.0
    %109 = vmatprep.mubr.f32.mxu0 0.0
    %110 = vmatmul.mubr.f32.gmra.mrb[0].mxu0 %v43
    %v111 = vpop.f32.mrb[0].mxu0
    %v112 = vadd.f32 %v39, %v111
    %v113 = vpop.f32.mrb[0].mxu0
    %v114 = vadd.f32 %v39, %v113
    %115 = vdwg.mxu0
    %v116 = vmax.f32 %v112, 0.0
    %v117 = vmax.f32 %v114, 0.0
    %v118 = vlaneseq
    %v119 = vand.u32 %v118, 127
    %v120 = vadd.s32 %v119, 128
    %vm121 = vcmp.lt.s32.totalorder %v119, 0
    %v122 = vsub.s32 0, %v119
    %v123 = vsel %vm121, %v122, %v119
    %v124 = vshrl.u32 %v123, 7
    %v125 = vand.u32 %v123, 127
    %v126 = vsub.s32 0, %v125
    %v127 = vsel %vm121, %v126, %v125
    %vm128 = vcmp.lt.s32.totalorder %v120, 0
    %v129 = vsub.s32 0, %v120
    %v130 = vsel %vm128, %v129, %v120
    %v131 = vshrl.u32 %v130, 7
    %v132 = vand.u32 %v130, 127
    %v133 = vsub.s32 0, %v132
    %v134 = vsel %vm128, %v133, %v132
    %vm135 = vcmp.ne.s32.totalorder %v127, 0
    %vm136 = vcmp.ne.s32.totalorder %v134, 0
    %vm137 = vcmp.lt.s32.totalorder %v127, 0
    %vm138 = vcmp.lt.s32.totalorder %v134, 0
    %vm139 = vmand %vm137, %vm135
    %vm140 = vmand %vm138, %vm136
    %v141 = vadd.s32 %v127, 128
    %v142 = vadd.s32 %v134, 128
    %v143 = vsel %vm139, %v141, %v127
    %v144 = vsel %vm140, %v142, %v134
    %vm145 = vcmp.lt.s32.totalorder %v143, 16
    %vm146 = vcmp.lt.s32.totalorder %v144, 16
    %v147 = vsel %vm145, 1, 0
    %v148 = vsel %vm146, 1, 0
    %vm149 = vcmp.eq.s32.totalorder %v147, 1
    %vm150 = vcmp.eq.s32.totalorder %v148, 1
    %v151 = vsel %vm149, %v116, 0.0
    %v152 = vsel %vm150, %v117, 0.0
    %153 = vrot.lane.b32.xlu0 %v151, 3
    %v154 = vpop.permute.xlu0 %153
    %155 = vrot.lane.b32.xlu0 %v152, 3
    %v156 = vpop.permute.xlu0 %155
    %vm157 = vcmp.lt.s32.totalorder %v119, 3
    %v158 = vsel %vm157, %v154, %v156
    %v159 = vsel %vm157, %v156, %v154
    %160 = vst [vmem:[#allocation2] sm:$0xff] %v159
    %161 = vst [vmem:[#allocation2 + $0x8] sm:$0xff] %v158
    %162 = vrot.lane.b32.xlu0 %v151, 2
    %v163 = vpop.permute.xlu0 %162
    %164 = vrot.lane.b32.xlu0 %v152, 2
    %v165 = vpop.permute.xlu0 %164
    %vm166 = vcmp.lt.s32.totalorder %v119, 2
    %v167 = vsel %vm166, %v163, %v165
    %v168 = vsel %vm166, %v165, %v163
    %169 = vst [vmem:[#allocation2 + $0x10] sm:$0xff] %v168
    %170 = vst [vmem:[#allocation2 + $0x18] sm:$0xff] %v167
    %171 = vrot.lane.b32.xlu0 %v151, 1
    %v172 = vpop.permute.xlu0 %171
    %173 = vrot.lane.b32.xlu0 %v152, 1
    %v174 = vpop.permute.xlu0 %173
    %vm175 = vcmp.lt.s32.totalorder %v119, 1
    %v176 = vsel %vm175, %v172, %v174
    %v177 = vsel %vm175, %v174, %v172
    %178 = vst [vmem:[#allocation2 + $0x20] sm:$0xff] %v177
    %179 = vst [vmem:[#allocation2 + $0x28] sm:$0xff] %v176
    %180 = vst [vmem:[#allocation2 + $0x30] sm:$0xff] %v151
    %181 = vst [vmem:[#allocation2 + $0x38] sm:$0xff] %v152
    %182 = vrot.lane.b32.xlu0 %v151, 127
    %v183 = vpop.permute.xlu0 %182
    %184 = vrot.lane.b32.xlu0 %v152, 127
    %v185 = vpop.permute.xlu0 %184
    %vm186 = vcmp.lt.s32.totalorder %v119, 127
    %v187 = vsel %vm186, %v183, %v185
    %v188 = vsel %vm186, %v185, %v183
    %189 = vst [vmem:[#allocation2 + $0x40] sm:$0xff] %v187
    %190 = vst [vmem:[#allocation2 + $0x48] sm:$0xff] %v188
    %191 = vrot.lane.b32.xlu0 %v151, 126
    %v192 = vpop.permute.xlu0 %191
    %193 = vrot.lane.b32.xlu0 %v152, 126
    %v194 = vpop.permute.xlu0 %193
    %vm195 = vcmp.lt.s32.totalorder %v119, 126
    %v196 = vsel %vm195, %v192, %v194
    %v197 = vsel %vm195, %v194, %v192
    %198 = vst [vmem:[#allocation2 + $0x50] sm:$0xff] %v196
    %199 = vst [vmem:[#allocation2 + $0x58] sm:$0xff] %v197
    %200 = vrot.lane.b32.xlu0 %v151, 125
    %v201 = vpop.permute.xlu0 %200
    %202 = vrot.lane.b32.xlu0 %v152, 125
    %v203 = vpop.permute.xlu0 %202
    %vm204 = vcmp.lt.s32.totalorder %v119, 125
    %v205 = vsel %vm204, %v201, %v203
    %v206 = vsel %vm204, %v203, %v201
    %207 = vst [vmem:[#allocation2 + $0x60] sm:$0xff] %v205
    %208 = vst [vmem:[#allocation2 + $0x68] sm:$0xff] %v206
    %v209 = vld [vmem:[%s2] sm:$0xff]
    %v210 = vld [vmem:[#allocation2] sm:$0xff]
    %v211 = vld [vmem:[#allocation2 + $0x8] sm:$0xff]
    %v212 = vld [vmem:[#allocation2 + $0x10] sm:$0xff]
    %v213 = vld [vmem:[#allocation2 + $0x18] sm:$0xff]
    %v214 = vld [vmem:[#allocation2 + $0x20] sm:$0xff]
    %v215 = vld [vmem:[#allocation2 + $0x28] sm:$0xff]
    %v216 = vld [vmem:[#allocation2 + $0x30] sm:$0xff]
    %v217 = vld [vmem:[#allocation2 + $0x38] sm:$0xff]
    %v218 = vld [vmem:[#allocation2 + $0x40] sm:$0xff]
    %v219 = vld [vmem:[#allocation2 + $0x48] sm:$0xff]
    %v220 = vld [vmem:[#allocation2 + $0x50] sm:$0xff]
    %v221 = vld [vmem:[#allocation2 + $0x58] sm:$0xff]
    %v222 = vld [vmem:[#allocation2 + $0x60] sm:$0xff]
    %v223 = vld [vmem:[#allocation2 + $0x68] sm:$0xff]
    %225 = vset.pattern.permute.xlu0 0
    %226 = vperm.xlu0 %225, %v22
    %v227 = vpop.permute.xlu0 %226
    %vm229 = vcmask 457728
    %v231 = vsel %vm229, %v209, 0
    %233 = vmatprep.subr.mxu0 %v211
    %234 = vmatpush1.msra.mxu0 %v210
    %235 = vmatprep.subr.mxu0 %v213
    %236 = vmatpush1.msra.mxu0 %v212
    %237 = vmatprep.subr.mxu0 %v215
    %238 = vmatpush1.msra.mxu0 %v214
    %239 = vmatprep.subr.mxu0 %v217
    %240 = vmatpush1.msra.mxu0 %v216
    %241 = vmatprep.subr.mxu0 %v219
    %242 = vmatpush1.msra.mxu0 %v218
    %243 = vmatprep.subr.mxu0 %v221
    %244 = vmatpush1.msra.mxu0 %v220
    %245 = vmatprep.subr.mxu0 %v223
    %246 = vmatpush1.msra.mxu0 %v222
    %247 = vmatprep.subr.mxu0 0.0
    %248 = vmatpush1.msra.mxu0 0.0
    %249 = vmatprep.subr.mxu0 0.0
    %250 = vmatpush1.msra.mxu0 0.0
    %251 = vmatprep.subr.mxu0 0.0
    %252 = vmatpush1.msra.mxu0 0.0
    %253 = vmatprep.subr.mxu0 0.0
    %254 = vmatpush1.msra.mxu0 0.0
    %255 = vmatprep.subr.mxu0 0.0
    %256 = vmatpush1.msra.mxu0 0.0
    %257 = vmatprep.subr.mxu0 0.0
    %258 = vmatpush1.msra.mxu0 0.0
    %259 = vmatprep.subr.mxu0 0.0
    %260 = vmatpush1.msra.mxu0 0.0
    %261 = vmatprep.subr.mxu0 0.0
    %262 = vmatpush1.msra.mxu0 0.0
    %263 = vmatprep.subr.mxu0 0.0
    %264 = vmatpush1.msra.mxu0 0.0
    %265 = vmatprep.subr.mxu0 0.0
    %266 = vmatpush1.msra.mxu0 0.0
    %267 = vmatprep.subr.mxu0 0.0
    %268 = vmatpush1.msra.mxu0 0.0
    %269 = vmatprep.subr.mxu0 0.0
    %270 = vmatpush1.msra.mxu0 0.0
    %271 = vmatprep.subr.mxu0 0.0
    %272 = vmatpush1.msra.mxu0 0.0
    %273 = vmatprep.subr.mxu0 0.0
    %274 = vmatpush1.msra.mxu0 0.0
    %275 = vmatprep.subr.mxu0 0.0
    %276 = vmatpush1.msra.mxu0 0.0
    %277 = vmatprep.subr.mxu0 0.0
    %278 = vmatpush1.msra.mxu0 0.0
    %279 = vmatprep.subr.mxu0 0.0
    %280 = vmatpush1.msra.mxu0 0.0
    %281 = vmatprep.subr.mxu0 0.0
    %282 = vmatpush1.msra.mxu0 0.0
    %283 = vmatprep.subr.mxu0 0.0
    %284 = vmatpush1.msra.mxu0 0.0
    %285 = vmatprep.subr.mxu0 0.0
    %286 = vmatpush1.msra.mxu0 0.0
    %287 = vmatprep.subr.mxu0 0.0
    %288 = vmatpush1.msra.mxu0 0.0
    %289 = vmatprep.subr.mxu0 0.0
    %290 = vmatpush1.msra.mxu0 0.0
    %291 = vmatprep.subr.mxu0 0.0
    %292 = vmatpush1.msra.mxu0 0.0
    %293 = vmatprep.subr.mxu0 0.0
    %294 = vmatpush1.msra.mxu0 0.0
    %295 = vmatprep.subr.mxu0 0.0
    %296 = vmatpush1.msra.mxu0 0.0
    %297 = vmatprep.mubr.f32.mxu0 0.0
    %298 = vmatmul.mubr.f32.gmra.mrb[0].mxu0 %v231
    %v299 = vpop.f32.mrb[0].mxu0
    %v300 = vadd.f32 %v227, %v299
    %v301 = vpop.f32.mrb[0].mxu0
    %v302 = vadd.f32 %v227, %v301
    %303 = vdwg.mxu0
    %v304 = vmax.f32 %v300, 0.0
    %v305 = vmax.f32 %v302, 0.0
    %v306 = vld [vmem:[%s3] sm:$0xff]
    %v307 = vld [vmem:[%s3 + $0x8] sm:$0xff]
    %v308 = vld [vmem:[%s3 + $0x10] sm:$0xff]
    %v309 = vld [vmem:[%s3 + $0x18] sm:$0xff]
    %311 = vset.pattern.permute.xlu0 0
    %312 = vperm.xlu0 %311, %v23
    %v313 = vpop.permute.xlu0 %312
    %316 = vset.pattern.permute.xlu0 0
    %317 = vperm.xlu0 %316, %v24
    %v318 = vpop.permute.xlu0 %317
    %321 = vset.pattern.permute.xlu0 0
    %322 = vperm.xlu0 %321, %v25
    %v323 = vpop.permute.xlu0 %322
    %326 = vset.pattern.permute.xlu0 0
    %327 = vperm.xlu0 %326, %v26
    %v328 = vpop.permute.xlu0 %327
    %vm330 = vcmask 64512
    %v332 = vsel %vm330, %v306, 0
    %v335 = vsel %vm330, %v307, 0
    %v338 = vsel %vm330, %v308, 0
    %v341 = vsel %vm330, %v309, 0
    %343 = vmatprep.subr.mxu0 %v305
    %344 = vmatpush1.msra.mxu0 %v304
    %345 = vmatprep.subr.mxu0 0.0
    %346 = vmatpush1.msra.mxu0 0.0
    %347 = vmatprep.subr.mxu0 0.0
    %348 = vmatpush1.msra.mxu0 0.0
    %349 = vmatprep.subr.mxu0 0.0
    %350 = vmatpush1.msra.mxu0 0.0
    %351 = vmatprep.subr.mxu0 0.0
    %352 = vmatpush1.msra.mxu0 0.0
    %353 = vmatprep.subr.mxu0 0.0
    %354 = vmatpush1.msra.mxu0 0.0
    %355 = vmatprep.subr.mxu0 0.0
    %356 = vmatpush1.msra.mxu0 0.0
    %357 = vmatprep.subr.mxu0 0.0
    %358 = vmatpush1.msra.mxu0 0.0
    %359 = vmatprep.subr.mxu0 0.0
    %360 = vmatpush1.msra.mxu0 0.0
    %361 = vmatprep.subr.mxu0 0.0
    %362 = vmatpush1.msra.mxu0 0.0
    %363 = vmatprep.subr.mxu0 0.0
    %364 = vmatpush1.msra.mxu0 0.0
    %365 = vmatprep.subr.mxu0 0.0
    %366 = vmatpush1.msra.mxu0 0.0
    %367 = vmatprep.subr.mxu0 0.0
    %368 = vmatpush1.msra.mxu0 0.0
    %369 = vmatprep.subr.mxu0 0.0
    %370 = vmatpush1.msra.mxu0 0.0
    %371 = vmatprep.subr.mxu0 0.0
    %372 = vmatpush1.msra.mxu0 0.0
    %373 = vmatprep.subr.mxu0 0.0
    %374 = vmatpush1.msra.mxu0 0.0
    %375 = vmatprep.subr.mxu0 0.0
    %376 = vmatpush1.msra.mxu0 0.0
    %377 = vmatprep.subr.mxu0 0.0
    %378 = vmatpush1.msra.mxu0 0.0
    %379 = vmatprep.subr.mxu0 0.0
    %380 = vmatpush1.msra.mxu0 0.0
    %381 = vmatprep.subr.mxu0 0.0
    %382 = vmatpush1.msra.mxu0 0.0
    %383 = vmatprep.subr.mxu0 0.0
    %384 = vmatpush1.msra.mxu0 0.0
    %385 = vmatprep.subr.mxu0 0.0
    %386 = vmatpush1.msra.mxu0 0.0
    %387 = vmatprep.subr.mxu0 0.0
    %388 = vmatpush1.msra.mxu0 0.0
    %389 = vmatprep.subr.mxu0 0.0
    %390 = vmatpush1.msra.mxu0 0.0
    %391 = vmatprep.subr.mxu0 0.0
    %392 = vmatpush1.msra.mxu0 0.0
    %393 = vmatprep.subr.mxu0 0.0
    %394 = vmatpush1.msra.mxu0 0.0
    %395 = vmatprep.subr.mxu0 0.0
    %396 = vmatpush1.msra.mxu0 0.0
    %397 = vmatprep.subr.mxu0 0.0
    %398 = vmatpush1.msra.mxu0 0.0
    %399 = vmatprep.subr.mxu0 0.0
    %400 = vmatpush1.msra.mxu0 0.0
    %401 = vmatprep.subr.mxu0 0.0
    %402 = vmatpush1.msra.mxu0 0.0
    %403 = vmatprep.subr.mxu0 0.0
    %404 = vmatpush1.msra.mxu0 0.0
    %405 = vmatprep.subr.mxu0 0.0
    %406 = vmatpush1.msra.mxu0 0.0
    %407 = vmatprep.mubr.f32.mxu0 0.0
    %408 = vmatmul.mubr.f32.gmra.mrb[0].mxu0 %v332
    %v409 = vpop.f32.mrb[0].mxu0
    %v410 = vadd.f32 %v313, %v409
    %v411 = vpop.f32.mrb[0].mxu0
    %v412 = vadd.f32 %v313, %v411
    %413 = vmatprep.mubr.f32.mxu0 0.0
    %414 = vmatmul.mubr.f32.gmra.mrb[0].mxu0 %v335
    %v415 = vpop.f32.mrb[0].mxu0
    %v416 = vadd.f32 %v318, %v415
    %v417 = vpop.f32.mrb[0].mxu0
    %v418 = vadd.f32 %v318, %v417
    %419 = vmatprep.mubr.f32.mxu0 0.0
    %420 = vmatmul.mubr.f32.gmra.mrb[0].mxu0 %v338
    %v421 = vpop.f32.mrb[0].mxu0
    %v422 = vadd.f32 %v323, %v421
    %v423 = vpop.f32.mrb[0].mxu0
    %v424 = vadd.f32 %v323, %v423
    %425 = vmatprep.mubr.f32.mxu0 0.0
    %426 = vmatmul.mubr.f32.gmra.mrb[0].mxu0 %v341
    %v427 = vpop.f32.mrb[0].mxu0
    %v428 = vadd.f32 %v328, %v427
    %v429 = vpop.f32.mrb[0].mxu0
    %v430 = vadd.f32 %v328, %v429
    %431 = vdwg.mxu0
    %v432 = vmax.f32 %v410, 0.0
    %v433 = vmax.f32 %v412, 0.0
    %v434 = vmax.f32 %v416, 0.0
    %v435 = vmax.f32 %v418, 0.0
    %v436 = vmax.f32 %v422, 0.0
    %v437 = vmax.f32 %v424, 0.0
    %v438 = vmax.f32 %v428, 0.0
    %v439 = vmax.f32 %v430, 0.0
    %v440 = vld [vmem:[%s0] sm:$0xff]
    %v441 = vld [vmem:[%s0 + $0x8] sm:$0xff]
    %v442 = vld [vmem:[%s0 + $0x10] sm:$0xff]
    %v443 = vld [vmem:[%s0 + $0x18] sm:$0xff]
    %v444 = vld [vmem:[%s0 + $0x20] sm:$0xff]
    %v445 = vld [vmem:[%s0 + $0x28] sm:$0xff]
    %v446 = vld [vmem:[%s0 + $0x30] sm:$0xff]
    %v447 = vld [vmem:[%s0 + $0x38] sm:$0xff]
    %v448 = vadd.f32 %v432, %v440
    %v449 = vadd.f32 %v433, %v441
    %v450 = vadd.f32 %v434, %v442
    %v451 = vadd.f32 %v435, %v443
    %v452 = vadd.f32 %v436, %v444
    %v453 = vadd.f32 %v437, %v445
    %v454 = vadd.f32 %v438, %v446
    %v455 = vadd.f32 %v439, %v447
    %v456 = vmax.f32 %v448, 0.0
    %v457 = vmax.f32 %v449, 0.0
    %v458 = vmax.f32 %v450, 0.0
    %v459 = vmax.f32 %v451, 0.0
    %v460 = vmax.f32 %v452, 0.0
    %v461 = vmax.f32 %v453, 0.0
    %v462 = vmax.f32 %v454, 0.0
    %v463 = vmax.f32 %v455, 0.0
    %464 = vst [vmem:[#allocation3] sm:$0xff] %v456
    %465 = vst [vmem:[#allocation3 + $0x8] sm:$0xff] %v457
    %466 = vst [vmem:[#allocation3 + $0x10] sm:$0xff] %v458
    %467 = vst [vmem:[#allocation3 + $0x18] sm:$0xff] %v459
    %468 = vst [vmem:[#allocation3 + $0x20] sm:$0xff] %v460
    %469 = vst [vmem:[#allocation3 + $0x28] sm:$0xff] %v461
    %470 = vst [vmem:[#allocation3 + $0x30] sm:$0xff] %v462
    %471 = vst [vmem:[#allocation3 + $0x38] sm:$0xff] %v463
    // Predicated region
    $region22: #{tpu_custom_call.1} parent=1 // pred_check
      _
    $region23: #{tpu_custom_call.1} parent=1 // pred_check_branch
      %473 = sbr.rel (0) target = $region25
    $region24: #{tpu_custom_call.1} parent=1 // pred_region
      %s475 = ssub.s32 1024, 1024
      %476 = vsyncadd [#allocation4], %s475
      %s477 = sshll.u32 [#allocation3], 4
      %s478 = int_to_ptr.vmem [resolvable:$true] %s477
      %483 = dma.vmem_to_hbm [thread:$0]  %s478, 1024, %s5, [#allocation4], 256, 256, 16
    $region25: #{tpu_custom_call.1} parent=1 // pred_fallthru
      _
    // Predicated region
    $region26: #{tpu_custom_call.1} parent=1 // pred_check
      _
    $region27: #{tpu_custom_call.1} parent=1 // pred_check_branch
      %485 = sbr.rel (0) target = $region29
    $region28: #{tpu_custom_call.1} parent=1 // pred_region
      %486 = dma.done [#allocation4], 1024
    $region29: #{tpu_custom_call.1} parent=1 // pred_fallthru
      _
    %487 = vsyncpa [#allocation4], 1

</llo_original>
